<compile_context>
chip_gen: v5e
topology: v5e:2x2
jax: 0.10.0
libtpu: 0.0.40
codegen_flags: <defaults>
</compile_context>

<pallas_src>
import jax
import jax.numpy as jnp
from jax import lax
from jax.experimental import pallas as pl
from jax.experimental.pallas import tpu as pltpu

B, H, W = 2, 16, 16
C_OUT, N_CLS = 16, 10
KH = KW = 3
N_TAP = KH * KW + 1            # 9 conv taps + 1 ones row (carries conv bias)
N_CH = C_OUT + 1               # 16 conv channels + 1 constant-one channel (carries fc bias)
N_PIX = B * H * W              # 512 im2col columns (pixels on lanes)
N_PAD = 128                    # lane-dense padded class dim


def testnet_kernel(wc_ref, patches_ref, pool_ref, wf_ref, out_ref):
    # Conv2d(1,16,3,pad=1) + conv bias + ReLU as ONE MXU matmul in channel-major layout:
    # (17, 10) @ (10, 512) -> (17, 512), fully lane-dense. Row 16 of wc selects the ones
    # row of patches, so y[16, :] == 1.0 (this lane later injects the FC bias).
    y = jnp.maximum(
        jnp.dot(wc_ref[...], patches_ref[...], preferred_element_type=jnp.float32),
        0.0)                                                              # (17, 512)

    # TODO(synk): `block(16)` is an unspecified constructor argument in the homework
    # script; treated as identity here.

    # AdaptiveAvgPool2d((1,1)) on the MXU: pool_ref is the 1/(H*W)-scaled per-batch
    # selector, so this is exactly the spatial mean (and exactly 1.0 for the bias lane).
    pooled = jnp.dot(y, pool_ref[...], preferred_element_type=jnp.float32)  # (17, B)

    # Linear(16,10): contract the channel axis of both operands; the FC bias sits in row 16
    # of wf and multiplies the constant-one lane. Classes are zero-padded to 128 lanes so
    # the output store is an unmasked, lane-dense vst.
    out_ref[...] = lax.dot_general(
        pooled, wf_ref[...],
        dimension_numbers=(((0,), (0,)), ((), ())),
        preferred_element_type=jnp.float32)                               # (B, 128)


@jax.jit
def testnet_forward(x_nchw, w_conv, b_conv, w_fc, b_fc):
    """x_nchw: (B, 1, H, W) f32. Params in PyTorch layouts:
       w_conv (16,1,3,3), b_conv (16,), w_fc (10,16), b_fc (10,)."""
    # --- wrapper glue (fused by jit): im2col (transposed), param re-layout, folds ---
    x = x_nchw[:, 0, :, :].astype(jnp.float32)                            # (B, H, W)
    xp = jnp.pad(x, ((0, 0), (1, 1), (1, 1)))                             # (B, H+2, W+2)
    taps = [xp[:, ki:ki + H, kj:kj + W].reshape(N_PIX)
            for ki in range(KH) for kj in range(KW)]                      # 9 x (512,)
    patches_t = jnp.stack(taps + [jnp.ones((N_PIX,), jnp.float32)], axis=0)  # (10, 512)

    wc = w_conv[:, 0, :, :].reshape(C_OUT, KH * KW).astype(jnp.float32)   # (16, 9)
    wc_aug = jnp.concatenate([wc, b_conv.reshape(C_OUT, 1)], axis=1)      # (16, 10)
    ones_row = jnp.zeros((1, N_TAP), jnp.float32).at[0, N_TAP - 1].set(1.0)
    wc_aug = jnp.concatenate([wc_aug, ones_row], axis=0)                  # (17, 10)

    # Per-batch mean selector: pool_sel[p, b] = 1/(H*W) if pixel p belongs to batch b.
    pool_sel = jnp.repeat(jnp.eye(B, dtype=jnp.float32), H * W, axis=0) / float(H * W)

    wf_aug = jnp.zeros((N_CH, N_PAD), jnp.float32)
    wf_aug = wf_aug.at[:C_OUT, :N_CLS].set(w_fc.T.astype(jnp.float32))    # weights
    wf_aug = wf_aug.at[C_OUT, :N_CLS].set(b_fc.astype(jnp.float32))       # fc bias row

    cost = pl.CostEstimate(
        flops=2 * N_CH * N_TAP * N_PIX        # conv matmul
              + N_CH * N_PIX                  # ReLU
              + 2 * N_CH * N_PIX * B          # MXU pooling
              + 2 * B * N_CH * N_PAD,         # fc matmul
        transcendentals=0,
        bytes_accessed=4 * (patches_t.size + wc_aug.size + pool_sel.size
                            + wf_aug.size + B * N_PAD),
    )

    vmem = pltpu.MemorySpace.VMEM
    out_padded = pl.pallas_call(
        testnet_kernel,
        out_shape=jax.ShapeDtypeStruct((B, N_PAD), jnp.float32),
        in_specs=[pl.BlockSpec(memory_space=vmem)] * 4,
        out_specs=pl.BlockSpec(memory_space=vmem),
        cost_estimate=cost,
    )(wc_aug, patches_t, pool_sel, wf_aug)

    return out_padded[:, :N_CLS]                                          # (B, 10)


def testnet_reference(x_nchw, w_conv, b_conv, w_fc, b_fc):
    y = lax.conv_general_dilated(
        x_nchw, w_conv, window_strides=(1, 1), padding=((1, 1), (1, 1)),
        dimension_numbers=("NCHW", "OIHW", "NCHW"))
    y = y + b_conv[None, :, None, None]
    y = jnp.maximum(y, 0.0)
    pooled = jnp.mean(y, axis=(2, 3))                                     # (B, 16)
    return pooled @ w_fc.T + b_fc[None, :]


if __name__ == "__main__":
    key = jax.random.PRNGKey(0)
    kx, kwc, kbc, kwf, kbf = jax.random.split(key, 5)

    x = jax.random.normal(kx, (B, 1, H, W), dtype=jnp.float32)
    w_conv = jax.random.normal(kwc, (C_OUT, 1, KH, KW), dtype=jnp.float32) * 0.1
    b_conv = jax.random.normal(kbc, (C_OUT,), dtype=jnp.float32) * 0.1
    w_fc = jax.random.normal(kwf, (N_CLS, C_OUT), dtype=jnp.float32) * 0.1
    b_fc = jax.random.normal(kbf, (N_CLS,), dtype=jnp.float32) * 0.1

    out = testnet_forward(x, w_conv, b_conv, w_fc, b_fc)
    out = jax.block_until_ready(out)

    ref = testnet_reference(x, w_conv, b_conv, w_fc, b_fc)
    assert out.shape == (B, N_CLS)
    assert jnp.allclose(out, ref, atol=1e-4, rtol=1e-4), (out, ref)

    print("KERNEL_OK")
</pallas_src>

<mosaic_0001>
module attributes {stable_mosaic.version = 11 : i64} {
  func.func @testnet_kernel(%arg0: memref<17x10xf32, #tpu.memory_space<vmem>>, %arg1: memref<10x512xf32, #tpu.memory_space<vmem>>, %arg2: memref<512x2xf32, #tpu.memory_space<vmem>>, %arg3: memref<17x128xf32, #tpu.memory_space<vmem>>, %arg4: memref<2x128xf32, #tpu.memory_space<vmem>>) attributes {dimension_semantics = [], scalar_prefetch = 0 : i64, scratch_operands = 0 : i64, tpu.core_type = #tpu.core_type<tc>} {
    %c0 = arith.constant 0 : index
    %c0_0 = arith.constant 0 : index
    %0 = vector.load %arg0[%c0, %c0_0] : memref<17x10xf32, #tpu.memory_space<vmem>>, vector<17x10xf32>
    %c0_1 = arith.constant 0 : index
    %c0_2 = arith.constant 0 : index
    %1 = vector.load %arg1[%c0_1, %c0_2] : memref<10x512xf32, #tpu.memory_space<vmem>>, vector<10x512xf32>
    %cst = arith.constant dense<0.000000e+00> : vector<17x512xf32>
    %2 = tpu.matmul %0, %1, %cst {dimension_numbers = #tpu.dot_dimension_numbers<[1], [0], [0], [1], [0, 0, 1, 1], [], []>} : vector<17x10xf32>, vector<10x512xf32>, vector<17x512xf32> -> vector<17x512xf32>
    %cst_3 = arith.constant 0.000000e+00 : f32
    %3 = vector.broadcast %cst_3 : f32 to vector<17x512xf32>
    %4 = arith.maximumf %2, %3 : vector<17x512xf32>
    %c0_4 = arith.constant 0 : index
    %c0_5 = arith.constant 0 : index
    %5 = vector.load %arg2[%c0_4, %c0_5] : memref<512x2xf32, #tpu.memory_space<vmem>>, vector<512x2xf32>
    %cst_6 = arith.constant dense<0.000000e+00> : vector<17x2xf32>
    %6 = tpu.matmul %4, %5, %cst_6 {dimension_numbers = #tpu.dot_dimension_numbers<[1], [0], [0], [1], [0, 0, 1, 1], [], []>} : vector<17x512xf32>, vector<512x2xf32>, vector<17x2xf32> -> vector<17x2xf32>
    %c0_7 = arith.constant 0 : index
    %c0_8 = arith.constant 0 : index
    %7 = vector.load %arg3[%c0_7, %c0_8] : memref<17x128xf32, #tpu.memory_space<vmem>>, vector<17x128xf32>
    %cst_9 = arith.constant dense<0.000000e+00> : vector<2x128xf32>
    %8 = tpu.matmul %6, %7, %cst_9 {dimension_numbers = #tpu.dot_dimension_numbers<[0], [0], [1], [1], [0, 1, 1, 1], [], []>} : vector<17x2xf32>, vector<17x128xf32>, vector<2x128xf32> -> vector<2x128xf32>
    %c0_10 = arith.constant 0 : index
    %c0_11 = arith.constant 0 : index
    %9 = vector.load %arg4[%c0_10, %c0_11] : memref<2x128xf32, #tpu.memory_space<vmem>>, vector<2x128xf32>
    tpu.vector_store %arg4[%c0_10, %c0_11], %8 {strides = array<i32>} : memref<2x128xf32, #tpu.memory_space<vmem>>, vector<2x128xf32>,
    return
  }
}

</mosaic_0001>

<llo_original>
// kernel: squeeze.3
$region0: #{squeeze.3}
  %s0 = inlined_call_operand.vmem [shape: f32[16,3,3], index: 0, kind: input, shape index: {}]
  %s1 = inlined_call_operand.vmem [shape: f32[16,9], index: 1, kind: output, shape index: {}]
  $region1: #{squeeze.3} parent=0
    #allocation0 [shape = 'u8[12288]{0}', space=vmem, size = 0x3000, scoped, tag = 'scoped mem for input reshape']
    %s3 = ssub.s32 16, 1
    %s4 = scalar_lea.vmem %s0, 8
    %v5 = vld [vmem:[%s4] sm:%s3]
    %s6 = scalar_lea.vmem [#allocation0], 16
    %7 = vst [vmem:[%s6] sm:%s3] %v5
    %s8 = scalar_lea.vmem %s0, 4
    %v9 = vld [vmem:[%s8] sm:%s3]
    %s10 = scalar_lea.vmem [#allocation0], 8
    %11 = vst [vmem:[%s10] sm:%s3] %v9
    %v12 = vld [vmem:[%s0] sm:%s3]
    %13 = vst [vmem:[#allocation0] sm:%s3] %v12
    %v14 = vld [vmem:[#allocation0] sm:$0x7]
    %vm15 = vcmask 130048
    %16 = vst.msk [vmem:[%s1] sm:$0x7] %vm15, %v14
    %s17 = scalar_lea.vmem [#allocation0], 8
    %v18 = vld [vmem:[%s17] sm:$0x7]
    %vm19 = vcmask 130048
    %s20 = scalar_lea.vmem %s1, 3
    %21 = vst.msk [vmem:[%s20] sm:$0x7] %vm19, %v18
    %s22 = scalar_lea.vmem [#allocation0], 16
    %v23 = vld [vmem:[%s22] sm:$0x7]
    %vm24 = vcmask 130048
    %s25 = scalar_lea.vmem %s1, 6
    %26 = vst.msk [vmem:[%s25] sm:$0x7] %vm24, %v23

// kernel: testnet_forward.1
$region0: #{testnet_forward.1}
  #allocation0 [shape = 'u32[]', space=smem, size = 0x4, offset = 0x4, fixed_abs, tag = 'smem constant byte address 0x4 - core index']
  #allocation1 [shape = 'u32[72,128]{1,0:T(1,128)}', space=vmem, size = 0x9000, scoped, tag = 'internal scratch']
  %s0 = inlined_call_operand.vmem [shape: f32[17,10], index: 0, kind: input, shape index: {}]
  %s1 = inlined_call_operand.vmem [shape: f32[10,512], index: 1, kind: input, shape index: {}]
  %s2 = inlined_call_operand.vmem [shape: f32[512,2], index: 2, kind: input, shape index: {}]
  %s3 = inlined_call_operand.vmem [shape: f32[17,128], index: 3, kind: input, shape index: {}]
  %s4 = inlined_call_operand.hbm [shape: f32[2,128], index: 4, kind: output, shape index: {}]
  %s5 = sld [smem:[#allocation0]]
  $region26: #{testnet_forward.1} parent=0
    _
  %s7 = ssub.s32 1, %s5
  %s8 = scalar_select 0, %s7, %s5
  $region1: #{testnet_forward.1} parent=0
    #allocation2 [shape = 'u8[1024]{0}', space=vmem, size = 0x400, scoped, tag = 'output window, operand 0, single buffered']
    #allocation3 [shape = 's32[1]{0}', space=sflag, size = 0x4, scoped, tag = 'scoped memory for testnet_forward.1']
    %9 = vsyncpa [#allocation3], 0
    // Predicated region
    $region2: #{testnet_forward.1} parent=1 // pred_check
      _
    $region3: #{testnet_forward.1} parent=1 // pred_check_branch
      %11 = sbr.rel (0) target = $region5
    $region4: #{testnet_forward.1} parent=1 // pred_region
      _
    $region5: #{testnet_forward.1} parent=1 // pred_fallthru
      _
    // Predicated region
    $region6: #{testnet_forward.1} parent=1 // pred_check
      _
    $region7: #{testnet_forward.1} parent=1 // pred_check_branch
      %13 = sbr.rel (0) target = $region9
    $region8: #{testnet_forward.1} parent=1 // pred_region
      _
    $region9: #{testnet_forward.1} parent=1 // pred_fallthru
      _
    // Predicated region
    $region10: #{testnet_forward.1} parent=1 // pred_check
      _
    $region11: #{testnet_forward.1} parent=1 // pred_check_branch
      %15 = sbr.rel (0) target = $region13
    $region12: #{testnet_forward.1} parent=1 // pred_region
      _
    $region13: #{testnet_forward.1} parent=1 // pred_fallthru
      _
    // Predicated region
    $region14: #{testnet_forward.1} parent=1 // pred_check
      _
    $region15: #{testnet_forward.1} parent=1 // pred_check_branch
      %17 = sbr.rel (0) target = $region17
    $region16: #{testnet_forward.1} parent=1 // pred_region
      _
    $region17: #{testnet_forward.1} parent=1 // pred_fallthru
      _
    %v18 = vld [vmem:[%s0] sm:$0xff]
    %v19 = vld [vmem:[%s0 + $0x8] sm:$0xff]
    %v20 = vld [vmem:[%s0 + $0x10] sm:$0x1]
    %v21 = vld [vmem:[%s1] sm:$0xff]
    %v22 = vld [vmem:[%s1 + $0x8] sm:$0xff]
    %v23 = vld [vmem:[%s1 + $0x10] sm:$0xff]
    %v24 = vld [vmem:[%s1 + $0x18] sm:$0xff]
    %v25 = vld [vmem:[%s1 + $0x20] sm:$0x3]
    %v26 = vld [vmem:[%s1 + $0x28] sm:$0x3]
    %v27 = vld [vmem:[%s1 + $0x30] sm:$0x3]
    %v28 = vld [vmem:[%s1 + $0x38] sm:$0x3]
    %vm29 = vcmask 80896
    %v31 = vsel %vm29, %v18, 0
    %v34 = vsel %vm29, %v19, 0
    %v37 = vsel %vm29, %v20, 0
    %vm39 = vcmask 1041408
    %v41 = vsel %vm39, %v25, 0
    %v44 = vsel %vm39, %v26, 0
    %v47 = vsel %vm39, %v27, 0
    %v50 = vsel %vm39, %v28, 0
    %52 = vmatpush.msra.mxu0 0.0
    %53 = vmatpush.msra.mxu0 0.0
    %54 = vmatpush.msra.mxu0 0.0
    %55 = vmatpush.msra.mxu0 0.0
    %56 = vmatpush.msra.mxu0 0.0
    %57 = vmatpush.msra.mxu0 0.0
    %58 = vmatpush.msra.mxu0 0.0
    %59 = vmatpush.msra.mxu0 0.0
    %60 = vmatpush.msra.mxu0 0.0
    %61 = vmatpush.msra.mxu0 0.0
    %62 = vmatpush.msra.mxu0 0.0
    %63 = vmatpush.msra.mxu0 0.0
    %64 = vmatpush.msra.mxu0 0.0
    %65 = vmatpush.msra.mxu0 0.0
    %66 = vmatpush.msra.mxu0 %v41
    %67 = vmatpush.msra.mxu0 %v21
    %68 = vmatmul.f32.gmra.mxu0 %v31
    %v69 = vpop.f32.mrf.mxu0
    %v70 = vadd.f32 0.0, %v69
    %71 = vmatmul.f32.gmra.mxu0 %v34
    %v72 = vpop.f32.mrf.mxu0
    %v73 = vadd.f32 0.0, %v72
    %74 = vmatmul.f32.gmra.mxu0 %v37
    %v75 = vpop.f32.mrf.mxu0
    %v76 = vadd.f32 0.0, %v75
    %77 = vdwg.mxu0
    %78 = vmatpush.msra.mxu0 0.0
    %79 = vmatpush.msra.mxu0 0.0
    %80 = vmatpush.msra.mxu0 0.0
    %81 = vmatpush.msra.mxu0 0.0
    %82 = vmatpush.msra.mxu0 0.0
    %83 = vmatpush.msra.mxu0 0.0
    %84 = vmatpush.msra.mxu0 0.0
    %85 = vmatpush.msra.mxu0 0.0
    %86 = vmatpush.msra.mxu0 0.0
    %87 = vmatpush.msra.mxu0 0.0
    %88 = vmatpush.msra.mxu0 0.0
    %89 = vmatpush.msra.mxu0 0.0
    %90 = vmatpush.msra.mxu0 0.0
    %91 = vmatpush.msra.mxu0 0.0
    %92 = vmatpush.msra.mxu0 %v44
    %93 = vmatpush.msra.mxu0 %v22
    %94 = vmatmul.f32.gmra.mxu0 %v31
    %v95 = vpop.f32.mrf.mxu0
    %v96 = vadd.f32 0.0, %v95
    %97 = vmatmul.f32.gmra.mxu0 %v34
    %v98 = vpop.f32.mrf.mxu0
    %v99 = vadd.f32 0.0, %v98
    %100 = vmatmul.f32.gmra.mxu0 %v37
    %v101 = vpop.f32.mrf.mxu0
    %v102 = vadd.f32 0.0, %v101
    %103 = vdwg.mxu0
    %104 = vmatpush.msra.mxu0 0.0
    %105 = vmatpush.msra.mxu0 0.0
    %106 = vmatpush.msra.mxu0 0.0
    %107 = vmatpush.msra.mxu0 0.0
    %108 = vmatpush.msra.mxu0 0.0
    %109 = vmatpush.msra.mxu0 0.0
    %110 = vmatpush.msra.mxu0 0.0
    %111 = vmatpush.msra.mxu0 0.0
    %112 = vmatpush.msra.mxu0 0.0
    %113 = vmatpush.msra.mxu0 0.0
    %114 = vmatpush.msra.mxu0 0.0
    %115 = vmatpush.msra.mxu0 0.0
    %116 = vmatpush.msra.mxu0 0.0
    %117 = vmatpush.msra.mxu0 0.0
    %118 = vmatpush.msra.mxu0 %v47
    %119 = vmatpush.msra.mxu0 %v23
    %120 = vmatmul.f32.gmra.mxu0 %v31
    %v121 = vpop.f32.mrf.mxu0
    %v122 = vadd.f32 0.0, %v121
    %123 = vmatmul.f32.gmra.mxu0 %v34
    %v124 = vpop.f32.mrf.mxu0
    %v125 = vadd.f32 0.0, %v124
    %126 = vmatmul.f32.gmra.mxu0 %v37
    %v127 = vpop.f32.mrf.mxu0
    %v128 = vadd.f32 0.0, %v127
    %129 = vdwg.mxu0
    %130 = vmatpush.msra.mxu0 0.0
    %131 = vmatpush.msra.mxu0 0.0
    %132 = vmatpush.msra.mxu0 0.0
    %133 = vmatpush.msra.mxu0 0.0
    %134 = vmatpush.msra.mxu0 0.0
    %135 = vmatpush.msra.mxu0 0.0
    %136 = vmatpush.msra.mxu0 0.0
    %137 = vmatpush.msra.mxu0 0.0
    %138 = vmatpush.msra.mxu0 0.0
    %139 = vmatpush.msra.mxu0 0.0
    %140 = vmatpush.msra.mxu0 0.0
    %141 = vmatpush.msra.mxu0 0.0
    %142 = vmatpush.msra.mxu0 0.0
    %143 = vmatpush.msra.mxu0 0.0
    %144 = vmatpush.msra.mxu0 %v50
    %145 = vmatpush.msra.mxu0 %v24
    %146 = vmatmul.f32.gmra.mxu0 %v31
    %v147 = vpop.f32.mrf.mxu0
    %v148 = vadd.f32 0.0, %v147
    %149 = vmatmul.f32.gmra.mxu0 %v34
    %v150 = vpop.f32.mrf.mxu0
    %v151 = vadd.f32 0.0, %v150
    %152 = vmatmul.f32.gmra.mxu0 %v37
    %v153 = vpop.f32.mrf.mxu0
    %v154 = vadd.f32 0.0, %v153
    %155 = vdwg.mxu0
    %v156 = vmax.f32 %v70, 0.0
    %v157 = vmax.f32 %v96, 0.0
    %v158 = vmax.f32 %v122, 0.0
    %v159 = vmax.f32 %v148, 0.0
    %v160 = vmax.f32 %v73, 0.0
    %v161 = vmax.f32 %v99, 0.0
    %v162 = vmax.f32 %v125, 0.0
    %v163 = vmax.f32 %v151, 0.0
    %v164 = vmax.f32 %v76, 0.0
    %v165 = vmax.f32 %v102, 0.0
    %v166 = vmax.f32 %v128, 0.0
    %v167 = vmax.f32 %v154, 0.0
    %v168 = vld [vmem:[%s2] sm:$0xff]
    %v169 = vld [vmem:[%s2 + $0x8] sm:$0xff]
    %v170 = vld [vmem:[%s2 + $0x10] sm:$0xff]
    %v171 = vld [vmem:[%s2 + $0x18] sm:$0xff]
    %v172 = vld [vmem:[%s2 + $0x20] sm:$0xff]
    %v173 = vld [vmem:[%s2 + $0x28] sm:$0xff]
    %v174 = vld [vmem:[%s2 + $0x30] sm:$0xff]
    %v175 = vld [vmem:[%s2 + $0x38] sm:$0xff]
    %v176 = vld [vmem:[%s2 + $0x40] sm:$0xff]
    %v177 = vld [vmem:[%s2 + $0x48] sm:$0xff]
    %v178 = vld [vmem:[%s2 + $0x50] sm:$0xff]
    %v179 = vld [vmem:[%s2 + $0x58] sm:$0xff]
    %v180 = vld [vmem:[%s2 + $0x60] sm:$0xff]
    %v181 = vld [vmem:[%s2 + $0x68] sm:$0xff]
    %v182 = vld [vmem:[%s2 + $0x70] sm:$0xff]
    %v183 = vld [vmem:[%s2 + $0x78] sm:$0xff]
    %v184 = vld [vmem:[%s2 + $0x80] sm:$0xff]
    %v185 = vld [vmem:[%s2 + $0x88] sm:$0xff]
    %v186 = vld [vmem:[%s2 + $0x90] sm:$0xff]
    %v187 = vld [vmem:[%s2 + $0x98] sm:$0xff]
    %v188 = vld [vmem:[%s2 + $0xa0] sm:$0xff]
    %v189 = vld [vmem:[%s2 + $0xa8] sm:$0xff]
    %v190 = vld [vmem:[%s2 + $0xb0] sm:$0xff]
    %v191 = vld [vmem:[%s2 + $0xb8] sm:$0xff]
    %v192 = vld [vmem:[%s2 + $0xc0] sm:$0xff]
    %v193 = vld [vmem:[%s2 + $0xc8] sm:$0xff]
    %v194 = vld [vmem:[%s2 + $0xd0] sm:$0xff]
    %v195 = vld [vmem:[%s2 + $0xd8] sm:$0xff]
    %v196 = vld [vmem:[%s2 + $0xe0] sm:$0xff]
    %v197 = vld [vmem:[%s2 + $0xe8] sm:$0xff]
    %v198 = vld [vmem:[%s2 + $0xf0] sm:$0xff]
    %v199 = vld [vmem:[%s2 + $0xf8] sm:$0xff]
    %v200 = vld [vmem:[%s2 + $0x100] sm:$0xff]
    %v201 = vld [vmem:[%s2 + $0x108] sm:$0xff]
    %v202 = vld [vmem:[%s2 + $0x110] sm:$0xff]
    %v203 = vld [vmem:[%s2 + $0x118] sm:$0xff]
    %v204 = vld [vmem:[%s2 + $0x120] sm:$0xff]
    %v205 = vld [vmem:[%s2 + $0x128] sm:$0xff]
    %v206 = vld [vmem:[%s2 + $0x130] sm:$0xff]
    %v207 = vld [vmem:[%s2 + $0x138] sm:$0xff]
    %v208 = vld [vmem:[%s2 + $0x140] sm:$0xff]
    %v209 = vld [vmem:[%s2 + $0x148] sm:$0xff]
    %v210 = vld [vmem:[%s2 + $0x150] sm:$0xff]
    %v211 = vld [vmem:[%s2 + $0x158] sm:$0xff]
    %v212 = vld [vmem:[%s2 + $0x160] sm:$0xff]
    %v213 = vld [vmem:[%s2 + $0x168] sm:$0xff]
    %v214 = vld [vmem:[%s2 + $0x170] sm:$0xff]
    %v215 = vld [vmem:[%s2 + $0x178] sm:$0xff]
    %v216 = vld [vmem:[%s2 + $0x180] sm:$0xff]
    %v217 = vld [vmem:[%s2 + $0x188] sm:$0xff]
    %v218 = vld [vmem:[%s2 + $0x190] sm:$0xff]
    %v219 = vld [vmem:[%s2 + $0x198] sm:$0xff]
    %v220 = vld [vmem:[%s2 + $0x1a0] sm:$0xff]
    %v221 = vld [vmem:[%s2 + $0x1a8] sm:$0xff]
    %v222 = vld [vmem:[%s2 + $0x1b0] sm:$0xff]
    %v223 = vld [vmem:[%s2 + $0x1b8] sm:$0xff]
    %v224 = vld [vmem:[%s2 + $0x1c0] sm:$0xff]
    %v225 = vld [vmem:[%s2 + $0x1c8] sm:$0xff]
    %v226 = vld [vmem:[%s2 + $0x1d0] sm:$0xff]
    %v227 = vld [vmem:[%s2 + $0x1d8] sm:$0xff]
    %v228 = vld [vmem:[%s2 + $0x1e0] sm:$0xff]
    %v229 = vld [vmem:[%s2 + $0x1e8] sm:$0xff]
    %v230 = vld [vmem:[%s2 + $0x1f0] sm:$0xff]
    %v231 = vld [vmem:[%s2 + $0x1f8] sm:$0xff]
    %232 = vmatpush.msra.mxu0 %v183
    %233 = vmatpush.msra.mxu0 %v182
    %234 = vmatpush.msra.mxu0 %v181
    %235 = vmatpush.msra.mxu0 %v180
    %236 = vmatpush.msra.mxu0 %v179
    %237 = vmatpush.msra.mxu0 %v178
    %238 = vmatpush.msra.mxu0 %v177
    %239 = vmatpush.msra.mxu0 %v176
    %240 = vmatpush.msra.mxu0 %v175
    %241 = vmatpush.msra.mxu0 %v174
    %242 = vmatpush.msra.mxu0 %v173
    %243 = vmatpush.msra.mxu0 %v172
    %244 = vmatpush.msra.mxu0 %v171
    %245 = vmatpush.msra.mxu0 %v170
    %246 = vmatpush.msra.mxu0 %v169
    %247 = vmatpush.msra.mxu0 %v168
    %248 = vmatmul.f32.gmra.mxu0 %v156
    %v249 = vpop.f32.mrf.mxu0
    %v250 = vadd.f32 0.0, %v249
    %251 = vmatmul.f32.gmra.mxu0 %v160
    %v252 = vpop.f32.mrf.mxu0
    %v253 = vadd.f32 0.0, %v252
    %254 = vmatmul.f32.gmra.mxu0 %v164
    %v255 = vpop.f32.mrf.mxu0
    %v256 = vadd.f32 0.0, %v255
    %257 = vdwg.mxu0
    %258 = vmatpush.msra.mxu0 %v199
    %259 = vmatpush.msra.mxu0 %v198
    %260 = vmatpush.msra.mxu0 %v197
    %261 = vmatpush.msra.mxu0 %v196
    %262 = vmatpush.msra.mxu0 %v195
    %263 = vmatpush.msra.mxu0 %v194
    %264 = vmatpush.msra.mxu0 %v193
    %265 = vmatpush.msra.mxu0 %v192
    %266 = vmatpush.msra.mxu0 %v191
    %267 = vmatpush.msra.mxu0 %v190
    %268 = vmatpush.msra.mxu0 %v189
    %269 = vmatpush.msra.mxu0 %v188
    %270 = vmatpush.msra.mxu0 %v187
    %271 = vmatpush.msra.mxu0 %v186
    %272 = vmatpush.msra.mxu0 %v185
    %273 = vmatpush.msra.mxu0 %v184
    %274 = vmatmul.f32.gmra.mxu0 %v157
    %v275 = vpop.f32.mrf.mxu0
    %v276 = vadd.f32 %v250, %v275
    %277 = vmatmul.f32.gmra.mxu0 %v161
    %v278 = vpop.f32.mrf.mxu0
    %v279 = vadd.f32 %v253, %v278
    %280 = vmatmul.f32.gmra.mxu0 %v165
    %v281 = vpop.f32.mrf.mxu0
    %v282 = vadd.f32 %v256, %v281
    %283 = vdwg.mxu0
    %284 = vmatpush.msra.mxu0 %v215
    %285 = vmatpush.msra.mxu0 %v214
    %286 = vmatpush.msra.mxu0 %v213
    %287 = vmatpush.msra.mxu0 %v212
    %288 = vmatpush.msra.mxu0 %v211
    %289 = vmatpush.msra.mxu0 %v210
    %290 = vmatpush.msra.mxu0 %v209
    %291 = vmatpush.msra.mxu0 %v208
    %292 = vmatpush.msra.mxu0 %v207
    %293 = vmatpush.msra.mxu0 %v206
    %294 = vmatpush.msra.mxu0 %v205
    %295 = vmatpush.msra.mxu0 %v204
    %296 = vmatpush.msra.mxu0 %v203
    %297 = vmatpush.msra.mxu0 %v202
    %298 = vmatpush.msra.mxu0 %v201
    %299 = vmatpush.msra.mxu0 %v200
    %300 = vmatmul.f32.gmra.mxu0 %v158
    %v301 = vpop.f32.mrf.mxu0
    %v302 = vadd.f32 %v276, %v301
    %303 = vmatmul.f32.gmra.mxu0 %v162
    %v304 = vpop.f32.mrf.mxu0
    %v305 = vadd.f32 %v279, %v304
    %306 = vmatmul.f32.gmra.mxu0 %v166
    %v307 = vpop.f32.mrf.mxu0
    %v308 = vadd.f32 %v282, %v307
    %309 = vdwg.mxu0
    %310 = vmatpush.msra.mxu0 %v231
    %311 = vmatpush.msra.mxu0 %v230
    %312 = vmatpush.msra.mxu0 %v229
    %313 = vmatpush.msra.mxu0 %v228
    %314 = vmatpush.msra.mxu0 %v227
    %315 = vmatpush.msra.mxu0 %v226
    %316 = vmatpush.msra.mxu0 %v225
    %317 = vmatpush.msra.mxu0 %v224
    %318 = vmatpush.msra.mxu0 %v223
    %319 = vmatpush.msra.mxu0 %v222
    %320 = vmatpush.msra.mxu0 %v221
    %321 = vmatpush.msra.mxu0 %v220
    %322 = vmatpush.msra.mxu0 %v219
    %323 = vmatpush.msra.mxu0 %v218
    %324 = vmatpush.msra.mxu0 %v217
    %325 = vmatpush.msra.mxu0 %v216
    %326 = vmatmul.f32.gmra.mxu0 %v159
    %v327 = vpop.f32.mrf.mxu0
    %v328 = vadd.f32 %v302, %v327
    %329 = vmatmul.f32.gmra.mxu0 %v163
    %v330 = vpop.f32.mrf.mxu0
    %v331 = vadd.f32 %v305, %v330
    %332 = vmatmul.f32.gmra.mxu0 %v167
    %v333 = vpop.f32.mrf.mxu0
    %v334 = vadd.f32 %v308, %v333
    %335 = vdwg.mxu0
    %v336 = vld [vmem:[%s3] sm:$0xff]
    %v337 = vld [vmem:[%s3 + $0x8] sm:$0xff]
    %v338 = vld [vmem:[%s3 + $0x10] sm:$0x1]
    %339 = vxpose.xlu0.b32.start [1/16] %v328, 128
    %340 = vxpose.xlu0.b32.cont [2/16] %v331, 128
    %341 = vxpose.xlu0.b32.cont [3/16] %v334, 128
    %342 = vxpose.xlu0.b32.cont [4/16] 0.0, 128
    %343 = vxpose.xlu0.b32.cont [5/16] 0.0, 128
    %344 = vxpose.xlu0.b32.cont [6/16] 0.0, 128
    %345 = vxpose.xlu0.b32.cont [7/16] 0.0, 128
    %346 = vxpose.xlu0.b32.cont [8/16] 0.0, 128
    %347 = vxpose.xlu0.b32.cont [9/16] 0.0, 128
    %348 = vxpose.xlu0.b32.cont [10/16] 0.0, 128
    %349 = vxpose.xlu0.b32.cont [11/16] 0.0, 128
    %350 = vxpose.xlu0.b32.cont [12/16] 0.0, 128
    %351 = vxpose.xlu0.b32.cont [13/16] 0.0, 128
    %352 = vxpose.xlu0.b32.cont [14/16] 0.0, 128
    %353 = vxpose.xlu0.b32.cont [15/16] 0.0, 128
    %354 = vxpose.xlu0.b32.end [16/16] 0.0, 128
    %v355 = vpop.trf.xlu0
    %v356 = vpop.trf.xlu0
    %v357 = vpop.trf.xlu0
    %v358 = vpop.trf.xlu0
    %v359 = vpop.trf.xlu0
    %v360 = vpop.trf.xlu0
    %v361 = vpop.trf.xlu0
    %v362 = vpop.trf.xlu0
    %v363 = vpop.trf.xlu0
    %v364 = vpop.trf.xlu0
    %v365 = vpop.trf.xlu0
    %v366 = vpop.trf.xlu0
    %v367 = vpop.trf.xlu0
    %v368 = vpop.trf.xlu0
    %v369 = vpop.trf.xlu0
    %v370 = vpop.trf.xlu0
    %vm371 = vcmask 138240
    %v373 = vsel %vm371, %v355, 0
    %vm375 = vcmask 1040384
    %v377 = vsel %vm375, %v338, 0
    %379 = vmatpush.msra.mxu0 0.0
    %380 = vmatpush.msra.mxu0 0.0
    %381 = vmatpush.msra.mxu0 0.0
    %382 = vmatpush.msra.mxu0 0.0
    %383 = vmatpush.msra.mxu0 0.0
    %384 = vmatpush.msra.mxu0 0.0
    %385 = vmatpush.msra.mxu0 0.0
    %386 = vmatpush.msra.mxu0 0.0
    %387 = vmatpush.msra.mxu0 0.0
    %388 = vmatpush.msra.mxu0 0.0
    %389 = vmatpush.msra.mxu0 0.0
    %390 = vmatpush.msra.mxu0 0.0
    %391 = vmatpush.msra.mxu0 0.0
    %392 = vmatpush.msra.mxu0 %v377
    %393 = vmatpush.msra.mxu0 %v337
    %394 = vmatpush.msra.mxu0 %v336
    %395 = vmatmul.f32.gmra.mxu0 %v373
    %v396 = vpop.f32.mrf.mxu0
    %v397 = vadd.f32 0.0, %v396
    %398 = vdwg.mxu0
    %399 = vst [vmem:[#allocation2] sm:$0x3] %v397
    // Predicated region
    $region18: #{testnet_forward.1} parent=1 // pred_check
      _
    $region19: #{testnet_forward.1} parent=1 // pred_check_branch
      %401 = sbr.rel (0) target = $region21
    $region20: #{testnet_forward.1} parent=1 // pred_region
      %403 = vsyncadd [#allocation3], 0
      %s405 = sshll.u32 [#allocation2], 4
      %s406 = int_to_ptr.vmem [resolvable:$true] %s405
      %s407 = sshll.u32 %s4, 4
      %s408 = int_to_ptr.hbm [resolvable:$true] %s407
      %410 = dma.vmem_to_hbm [thread:$0]  %s406, 32, %s408, [#allocation3]
    $region21: #{testnet_forward.1} parent=1 // pred_fallthru
      _
    // Predicated region
    $region22: #{testnet_forward.1} parent=1 // pred_check
      _
    $region23: #{testnet_forward.1} parent=1 // pred_check_branch
      %412 = sbr.rel (0) target = $region25
    $region24: #{testnet_forward.1} parent=1 // pred_region
      %414 = dma.done [#allocation3], 32
    $region25: #{testnet_forward.1} parent=1 // pred_fallthru
      _
    %415 = vsyncpa [#allocation3], 1

</llo_original>
